<compile_context>
chip_gen: v7x
topology: tpu7x:2x2x1
jax: 0.10.0
libtpu: 0.0.40
codegen_flags: <defaults>
</compile_context>

<pallas_src>
import functools

import jax
import jax.numpy as jnp
from jax.experimental import pallas as pl
from jax.experimental.pallas import tpu as pltpu


# ----------------------------------------------------------------------------
# Coordinate tensor (PositionalEncodingImageGrid.build_coord_tensor)
# ----------------------------------------------------------------------------
def build_coord_tensor(g):
    coords = jnp.linspace(-1.0, 1.0, g)
    xg = jnp.tile(coords[None, :], (g, 1))          # x varies along columns
    yg = jnp.tile(coords[:, None], (1, g))          # y varies along rows
    return jnp.stack([xg, yg], axis=2).reshape(g * g, 2).astype(jnp.float32)


def _round_up(x, m):
    return ((x + m - 1) // m) * m


# ----------------------------------------------------------------------------
# Fused forward kernel (one batch tile per grid step)
# ----------------------------------------------------------------------------
def _fused_kernel(text_ref, img_ref,
                  wt_ref, bt_ref, wi_ref, bi_ref,
                  w1i_ref, w1t_ref, b1_ref,
                  w2_ref, b2_ref, w3_ref, b3_ref,
                  o_ref):
    f32 = jnp.float32

    # text branch: mean over L folded into K of the matmul (K = L*Dw, lane-dense)
    t_feat = jnp.dot(text_ref[...], wt_ref[...],
                     preferred_element_type=f32) + bt_ref[...]        # (BT, E)

    # image branch: mean over regions + pos-enc folded into W_i'/bi_eff
    # (K = Dv*G*G, native (Dv, G, G) memory order, lane-dense)
    i_feat = jnp.dot(img_ref[...], wi_ref[...],
                     preferred_element_type=f32) + bi_ref[...]        # (BT, E)

    # cat([image, text], dim=1) @ W1 == image @ W1[:E] + text @ W1[E:]
    h1 = (jnp.dot(i_feat, w1i_ref[...], preferred_element_type=f32)
          + jnp.dot(t_feat, w1t_ref[...], preferred_element_type=f32)
          + b1_ref[...])
    h1 = jnp.maximum(h1, 0.1 * h1)                                    # LeakyReLU(0.1)

    h2 = jnp.dot(h1, w2_ref[...], preferred_element_type=f32) + b2_ref[...]
    h2 = jnp.maximum(h2, 0.1 * h2)                                    # LeakyReLU(0.1)

    logits = jnp.dot(h2, w3_ref[...], preferred_element_type=f32) + b3_ref[...]
    # sigmoid: divide goes to the EUP (approx reciprocal), lane-dense store
    o_ref[...] = pl.reciprocal(1.0 + jnp.exp(-logits), approx=True)


# ----------------------------------------------------------------------------
# Jitted forward (pallas_call wrapper)
# ----------------------------------------------------------------------------
def _forward_impl(text, image, wtL, bt, wiG, bi_eff,
                  w1i, w1t, b1, w2, b2, w3p, b3p,
                  *, num_labels, batch_tile):
    bs, L, Dw = text.shape
    Dv = image.shape[1]
    GG = image.shape[2] * image.shape[3]
    E = wtL.shape[1]
    E2 = w2.shape[1]
    NLp = w3p.shape[1]                       # padded (lane-dense) label width

    # Row-major reshapes are free (no relayout); image keeps its native order.
    text_flat = text.reshape(bs, L * Dw).astype(jnp.float32)
    img_flat = image.reshape(bs, Dv * GG).astype(jnp.float32)

    # Batch tile: multiple of 8, capped at batch_tile rows so large batches get
    # a multi-step grid (pipelining + megacore). Pad ragged batches.
    bt_rows = min(batch_tile, _round_up(bs, 8))
    padded_bs = _round_up(bs, bt_rows)
    if padded_bs != bs:
        text_flat = jnp.pad(text_flat, ((0, padded_bs - bs), (0, 0)))
        img_flat = jnp.pad(img_flat, ((0, padded_bs - bs), (0, 0)))

    def const2d(shape):
        return pl.BlockSpec(shape, lambda b: (0, 0))

    # NOTE: grid-invariant weight inputs could use pipeline_mode=pl.Buffered(1)
    # to single-buffer them, but at ~110 KiB total the saving is negligible.
    out = pl.pallas_call(
        _fused_kernel,
        out_shape=jax.ShapeDtypeStruct((padded_bs, NLp), jnp.float32),
        grid=(padded_bs // bt_rows,),
        in_specs=[
            pl.BlockSpec((bt_rows, L * Dw), lambda b: (b, 0)),     # text (flat)
            pl.BlockSpec((bt_rows, Dv * GG), lambda b: (b, 0)),    # image (flat, native)
            const2d((L * Dw, E)), const2d((1, E)),                 # tiled map_text
            const2d((Dv * GG, E)), const2d((1, E)),                # repeated map_image (+pe)
            const2d((E, E)), const2d((E, E)), const2d((1, E)),     # map_to_embed_1 (split)
            const2d((E, E2)), const2d((1, E2)),                    # map_to_embed_2
            const2d((E2, NLp)), const2d((1, NLp)),                 # class head (lane-padded)
        ],
        out_specs=pl.BlockSpec((bt_rows, NLp), lambda b: (b, 0)),
        compiler_params=pltpu.CompilerParams(
            dimension_semantics=("parallel",)),
    )(text_flat, img_flat, wtL, bt, wiG, bi_eff,
      w1i, w1t, b1, w2, b2, w3p, b3p)

    return out[:bs, :num_labels]


_forward_jit = jax.jit(_forward_impl, static_argnames=("num_labels", "batch_tile"))


# ----------------------------------------------------------------------------
# Module wrapper
# ----------------------------------------------------------------------------
class ConcatJointTransformerEncoder:
    # TODO(synk): self.joint_transformer (nn.TransformerEncoder) is built in the
    # PyTorch __init__ but never invoked in forward(), so it is omitted here
    # (as is dropout, a train-time-only op).
    def __init__(self, cfg, labels, key, *, batch_tile=512):
        E = cfg['model']['embed-dim']
        Dw = cfg['text-model']['word-dim']
        Dv = cfg['image-model']['feat-dim']
        G = cfg['image-model']['grid']
        NL = len(labels)
        self.E, self.Dw, self.Dv, self.G, self.NL = E, Dw, Dv, G, NL
        self.batch_tile = batch_tile

        ks = jax.random.split(key, 12)
        w = lambda k, s: (jax.random.normal(k, s, jnp.float32) * 0.1)
        b = lambda k, s: (jax.random.normal(k, s, jnp.float32) * 0.01)
        # Raw parameters (used by the pure-JAX reference).
        self.wpe, self.bpe = w(ks[0], (2, Dv)), b(ks[1], (Dv,))      # pos-enc map
        self.wt, self.bt = w(ks[2], (Dw, E)), b(ks[3], (E,))         # map_text
        self.wi, self.bi = w(ks[4], (Dv, E)), b(ks[5], (E,))         # map_image
        self.w1, self.b1 = w(ks[6], (2 * E, E)), b(ks[7], (E,))      # map_to_embed_1
        self.w2, self.b2 = w(ks[8], (E, E // 2)), b(ks[9], (E // 2,))
        self.w3, self.b3 = w(ks[10], (E // 2, NL)), b(ks[11], (NL,))
        self.ct = build_coord_tensor(G)                              # (G*G, 2)

        # ---- derived operands, computed ONCE (perf review item) -------------
        GG = G * G
        row = lambda v: v.reshape(1, -1)
        # pos-enc folded into an effective image bias
        pe = self.ct @ self.wpe + self.bpe                           # (GG, Dv)
        self.bi_eff = row(self.bi + jnp.mean(pe, axis=0) @ self.wi)  # (1, E)
        # map_image weight repeated per-region in native (Dv, G, G) order,
        # pre-scaled by 1/GG (folds the region mean into the matmul K dim)
        self.wi_rep = jnp.repeat(self.wi, GG, axis=0) / GG           # (Dv*GG, E)
        # split map_to_embed_1 so the lane-concat never happens in-kernel
        self.w1i, self.w1t = self.w1[:E, :], self.w1[E:, :]
        # lane-dense class head (pad labels to a multiple of 128 lanes)
        NLp = _round_up(max(NL, 128), 128)
        self.w3_pad = jnp.zeros((E // 2, NLp), jnp.float32).at[:, :NL].set(self.w3)
        self.b3_pad = jnp.zeros((1, NLp), jnp.float32).at[:, :NL].set(self.b3)
        self.bt_row, self.b1_row, self.b2_row = row(self.bt), row(self.b1), row(self.b2)
        # per-sequence-length tiled/scaled map_text weight (folds the L mean)
        self._wt_cache = {}

    def _wt_for_len(self, L):
        wtL = self._wt_cache.get(L)
        if wtL is None:
            wtL = jnp.tile(self.wt, (L, 1)) / L                      # (L*Dw, E)
            self._wt_cache[L] = wtL
        return wtL

    def __call__(self, text, text_len, image):
        del text_len  # unused by the original forward (kept for signature parity)
        if image is None:
            # TODO(synk): the image=None branch of the original feeds an
            # (bs, embed_dim) tensor into map_to_embed_1 which expects
            # 2*embed_dim features (shape mismatch in PyTorch too); not implemented.
            raise NotImplementedError("image=None path is inconsistent in the spec")
        L = text.shape[1]
        return _forward_jit(text, image, self._wt_for_len(L), self.bt_row,
                            self.wi_rep, self.bi_eff,
                            self.w1i, self.w1t, self.b1_row,
                            self.w2, self.b2_row, self.w3_pad, self.b3_pad,
                            num_labels=self.NL, batch_tile=self.batch_tile)


# ----------------------------------------------------------------------------
# Pure-JAX reference (faithful to the PyTorch op order) and driver
# ----------------------------------------------------------------------------
def _reference(enc, text, image):
    bs = text.shape[0]
    # text branch
    t = jnp.transpose(text, (1, 0, 2))                          # (L, bs, Dw)
    t = jnp.einsum('lbd,de->lbe', t, enc.wt) + enc.bt
    t = jnp.mean(t, axis=0)                                     # (bs, E)
    # image branch
    img = jnp.transpose(image.reshape(bs, enc.Dv, enc.G * enc.G), (2, 0, 1))
    pe = enc.ct @ enc.wpe + enc.bpe                             # (G*G, Dv)
    img = img + pe[:, None, :]
    img = jnp.einsum('rbd,de->rbe', img, enc.wi) + enc.bi
    img = jnp.mean(img, axis=0)                                 # (bs, E)
    # joint MLP head
    emb = jnp.concatenate([img, t], axis=1)
    h1 = emb @ enc.w1 + enc.b1
    h1 = jnp.where(h1 > 0, h1, 0.1 * h1)
    h2 = h1 @ enc.w2 + enc.b2
    h2 = jnp.where(h2 > 0, h2, 0.1 * h2)
    logits = h2 @ enc.w3 + enc.b3
    return 1.0 / (1.0 + jnp.exp(-logits))


if __name__ == "__main__":
    cfg = {
        'model': {'embed-dim': 32, 'feedforward-dim': 64, 'num-layers': 2},
        'text-model': {'word-dim': 32},
        'image-model': {'feat-dim': 32, 'grid': 4},
    }
    labels = [f"label_{i}" for i in range(16)]

    key = jax.random.PRNGKey(0)
    k_text, k_img, k_mod = jax.random.split(key, 3)

    bs, seq_len = 2, 8
    text = jax.random.normal(k_text, (bs, seq_len, cfg['text-model']['word-dim']),
                             jnp.float32)
    text_len = jnp.full((bs,), seq_len, jnp.int32)
    image = jax.random.normal(
        k_img, (bs, cfg['image-model']['feat-dim'],
                cfg['image-model']['grid'], cfg['image-model']['grid']),
        jnp.float32)

    enc = ConcatJointTransformerEncoder(cfg, labels, k_mod)
    probs = enc(text, text_len, image)
    probs = jax.block_until_ready(probs)

    assert probs.shape == (bs, len(labels)), probs.shape
    assert bool(jnp.all((probs >= 0.0) & (probs <= 1.0)))

    ref = _reference(enc, text, image)
    err = float(jnp.max(jnp.abs(probs - ref)))
    assert err < 2e-3, err

    print("KERNEL_OK")
</pallas_src>

<mosaic_0001>
module attributes {stable_mosaic.version = 11 : i64} {
  func.func @_fused_kernel(%arg0: i32, %arg1: memref<8x256xf32, #tpu.memory_space<vmem>>, %arg2: memref<8x512xf32, #tpu.memory_space<vmem>>, %arg3: memref<256x32xf32, #tpu.memory_space<vmem>>, %arg4: memref<1x32xf32, #tpu.memory_space<vmem>>, %arg5: memref<512x32xf32, #tpu.memory_space<vmem>>, %arg6: memref<1x32xf32, #tpu.memory_space<vmem>>, %arg7: memref<32x32xf32, #tpu.memory_space<vmem>>, %arg8: memref<32x32xf32, #tpu.memory_space<vmem>>, %arg9: memref<1x32xf32, #tpu.memory_space<vmem>>, %arg10: memref<32x16xf32, #tpu.memory_space<vmem>>, %arg11: memref<1x16xf32, #tpu.memory_space<vmem>>, %arg12: memref<16x128xf32, #tpu.memory_space<vmem>>, %arg13: memref<1x128xf32, #tpu.memory_space<vmem>>, %arg14: memref<8x128xf32, #tpu.memory_space<vmem>>) attributes {dimension_semantics = [#tpu.dimension_semantics<parallel>], iteration_bounds = array<i64: 1>, scalar_prefetch = 0 : i64, scratch_operands = 0 : i64, tpu.core_type = #tpu.core_type<tc>, window_params = [{transform_indices = @transform_0, window_bounds = array<i64: 8, 256>}, {transform_indices = @transform_1, window_bounds = array<i64: 8, 512>}, {pipeline_mode = #tpu.pipeline_mode<synchronous>, transform_indices = @transform_2, window_bounds = array<i64: 256, 32>}, {pipeline_mode = #tpu.pipeline_mode<synchronous>, transform_indices = @transform_3, window_bounds = array<i64: 1, 32>}, {pipeline_mode = #tpu.pipeline_mode<synchronous>, transform_indices = @transform_4, window_bounds = array<i64: 512, 32>}, {pipeline_mode = #tpu.pipeline_mode<synchronous>, transform_indices = @transform_5, window_bounds = array<i64: 1, 32>}, {pipeline_mode = #tpu.pipeline_mode<synchronous>, transform_indices = @transform_6, window_bounds = array<i64: 32, 32>}, {pipeline_mode = #tpu.pipeline_mode<synchronous>, transform_indices = @transform_7, window_bounds = array<i64: 32, 32>}, {pipeline_mode = #tpu.pipeline_mode<synchronous>, transform_indices = @transform_8, window_bounds = array<i64: 1, 32>}, {pipeline_mode = #tpu.pipeline_mode<synchronous>, transform_indices = @transform_9, window_bounds = array<i64: 32, 16>}, {pipeline_mode = #tpu.pipeline_mode<synchronous>, transform_indices = @transform_10, window_bounds = array<i64: 1, 16>}, {pipeline_mode = #tpu.pipeline_mode<synchronous>, transform_indices = @transform_11, window_bounds = array<i64: 16, 128>}, {pipeline_mode = #tpu.pipeline_mode<synchronous>, transform_indices = @transform_12, window_bounds = array<i64: 1, 128>}, {transform_indices = @transform_13, window_bounds = array<i64: 8, 128>}]} {
    %c0 = arith.constant 0 : index
    %c0_0 = arith.constant 0 : index
    %0 = vector.load %arg1[%c0, %c0_0] : memref<8x256xf32, #tpu.memory_space<vmem>>, vector<8x256xf32>
    %c0_1 = arith.constant 0 : index
    %c0_2 = arith.constant 0 : index
    %1 = vector.load %arg3[%c0_1, %c0_2] : memref<256x32xf32, #tpu.memory_space<vmem>>, vector<256x32xf32>
    %cst = arith.constant dense<0.000000e+00> : vector<8x32xf32>
    %2 = tpu.matmul %0, %1, %cst {dimension_numbers = #tpu.dot_dimension_numbers<[1], [0], [0], [1], [0, 0, 1, 1], [], []>} : vector<8x256xf32>, vector<256x32xf32>, vector<8x32xf32> -> vector<8x32xf32>
    %c0_3 = arith.constant 0 : index
    %c0_4 = arith.constant 0 : index
    %3 = vector.load %arg4[%c0_3, %c0_4] : memref<1x32xf32, #tpu.memory_space<vmem>>, vector<1x32xf32>
    %4 = vector.broadcast %3 : vector<1x32xf32> to vector<8x32xf32>
    %5 = arith.addf %2, %4 : vector<8x32xf32>
    %c0_5 = arith.constant 0 : index
    %c0_6 = arith.constant 0 : index
    %6 = vector.load %arg2[%c0_5, %c0_6] : memref<8x512xf32, #tpu.memory_space<vmem>>, vector<8x512xf32>
    %c0_7 = arith.constant 0 : index
    %c0_8 = arith.constant 0 : index
    %7 = vector.load %arg5[%c0_7, %c0_8] : memref<512x32xf32, #tpu.memory_space<vmem>>, vector<512x32xf32>
    %cst_9 = arith.constant dense<0.000000e+00> : vector<8x32xf32>
    %8 = tpu.matmul %6, %7, %cst_9 {dimension_numbers = #tpu.dot_dimension_numbers<[1], [0], [0], [1], [0, 0, 1, 1], [], []>} : vector<8x512xf32>, vector<512x32xf32>, vector<8x32xf32> -> vector<8x32xf32>
    %c0_10 = arith.constant 0 : index
    %c0_11 = arith.constant 0 : index
    %9 = vector.load %arg6[%c0_10, %c0_11] : memref<1x32xf32, #tpu.memory_space<vmem>>, vector<1x32xf32>
    %10 = vector.broadcast %9 : vector<1x32xf32> to vector<8x32xf32>
    %11 = arith.addf %8, %10 : vector<8x32xf32>
    %c0_12 = arith.constant 0 : index
    %c0_13 = arith.constant 0 : index
    %12 = vector.load %arg7[%c0_12, %c0_13] : memref<32x32xf32, #tpu.memory_space<vmem>>, vector<32x32xf32>
    %cst_14 = arith.constant dense<0.000000e+00> : vector<8x32xf32>
    %13 = tpu.matmul %11, %12, %cst_14 {dimension_numbers = #tpu.dot_dimension_numbers<[1], [0], [0], [1], [0, 0, 1, 1], [], []>} : vector<8x32xf32>, vector<32x32xf32>, vector<8x32xf32> -> vector<8x32xf32>
    %c0_15 = arith.constant 0 : index
    %c0_16 = arith.constant 0 : index
    %14 = vector.load %arg8[%c0_15, %c0_16] : memref<32x32xf32, #tpu.memory_space<vmem>>, vector<32x32xf32>
    %cst_17 = arith.constant dense<0.000000e+00> : vector<8x32xf32>
    %15 = tpu.matmul %5, %14, %cst_17 {dimension_numbers = #tpu.dot_dimension_numbers<[1], [0], [0], [1], [0, 0, 1, 1], [], []>} : vector<8x32xf32>, vector<32x32xf32>, vector<8x32xf32> -> vector<8x32xf32>
    %16 = arith.addf %13, %15 : vector<8x32xf32>
    %c0_18 = arith.constant 0 : index
    %c0_19 = arith.constant 0 : index
    %17 = vector.load %arg9[%c0_18, %c0_19] : memref<1x32xf32, #tpu.memory_space<vmem>>, vector<1x32xf32>
    %18 = vector.broadcast %17 : vector<1x32xf32> to vector<8x32xf32>
    %19 = arith.addf %16, %18 : vector<8x32xf32>
    %cst_20 = arith.constant 1.000000e-01 : f32
    %20 = vector.broadcast %cst_20 : f32 to vector<8x32xf32>
    %21 = arith.mulf %20, %19 : vector<8x32xf32>
    %22 = arith.maximumf %19, %21 : vector<8x32xf32>
    %c0_21 = arith.constant 0 : index
    %c0_22 = arith.constant 0 : index
    %23 = vector.load %arg10[%c0_21, %c0_22] : memref<32x16xf32, #tpu.memory_space<vmem>>, vector<32x16xf32>
    %cst_23 = arith.constant dense<0.000000e+00> : vector<8x16xf32>
    %24 = tpu.matmul %22, %23, %cst_23 {dimension_numbers = #tpu.dot_dimension_numbers<[1], [0], [0], [1], [0, 0, 1, 1], [], []>} : vector<8x32xf32>, vector<32x16xf32>, vector<8x16xf32> -> vector<8x16xf32>
    %c0_24 = arith.constant 0 : index
    %c0_25 = arith.constant 0 : index
    %25 = vector.load %arg11[%c0_24, %c0_25] : memref<1x16xf32, #tpu.memory_space<vmem>>, vector<1x16xf32>
    %26 = vector.broadcast %25 : vector<1x16xf32> to vector<8x16xf32>
    %27 = arith.addf %24, %26 : vector<8x16xf32>
    %cst_26 = arith.constant 1.000000e-01 : f32
    %28 = vector.broadcast %cst_26 : f32 to vector<8x16xf32>
    %29 = arith.mulf %28, %27 : vector<8x16xf32>
    %30 = arith.maximumf %27, %29 : vector<8x16xf32>
    %c0_27 = arith.constant 0 : index
    %c0_28 = arith.constant 0 : index
    %31 = vector.load %arg12[%c0_27, %c0_28] : memref<16x128xf32, #tpu.memory_space<vmem>>, vector<16x128xf32>
    %cst_29 = arith.constant dense<0.000000e+00> : vector<8x128xf32>
    %32 = tpu.matmul %30, %31, %cst_29 {dimension_numbers = #tpu.dot_dimension_numbers<[1], [0], [0], [1], [0, 0, 1, 1], [], []>} : vector<8x16xf32>, vector<16x128xf32>, vector<8x128xf32> -> vector<8x128xf32>
    %c0_30 = arith.constant 0 : index
    %c0_31 = arith.constant 0 : index
    %33 = vector.load %arg13[%c0_30, %c0_31] : memref<1x128xf32, #tpu.memory_space<vmem>>, vector<1x128xf32>
    %34 = vector.broadcast %33 : vector<1x128xf32> to vector<8x128xf32>
    %35 = arith.addf %32, %34 : vector<8x128xf32>
    %cst_32 = arith.constant 0.000000e+00 : f32
    %36 = vector.broadcast %cst_32 : f32 to vector<8x128xf32>
    %37 = arith.subf %36, %35 : vector<8x128xf32>
    %38 = math.exp %37 : vector<8x128xf32>
    %cst_33 = arith.constant 1.000000e+00 : f32
    %39 = vector.broadcast %cst_33 : f32 to vector<8x128xf32>
    %40 = arith.addf %39, %38 : vector<8x128xf32>
    %41 = tpu.reciprocal %40 {approx = true} : vector<8x128xf32> -> vector<8x128xf32>
    %c0_34 = arith.constant 0 : index
    %c0_35 = arith.constant 0 : index
    %42 = vector.load %arg14[%c0_34, %c0_35] : memref<8x128xf32, #tpu.memory_space<vmem>>, vector<8x128xf32>
    tpu.vector_store %arg14[%c0_34, %c0_35], %41 {strides = array<i32>} : memref<8x128xf32, #tpu.memory_space<vmem>>, vector<8x128xf32>,
    return
  }
  func.func @transform_0(%arg0: i32) -> (i32, i32) {
    %c0_i32 = arith.constant 0 : i32
    %c0_i32_0 = arith.constant 0 : i32
    return %arg0, %c0_i32 : i32, i32
  }
  func.func @transform_1(%arg0: i32) -> (i32, i32) {
    %c0_i32 = arith.constant 0 : i32
    %c0_i32_0 = arith.constant 0 : i32
    return %arg0, %c0_i32 : i32, i32
  }
  func.func @transform_2(%arg0: i32) -> (i32, i32) {
    %c0_i32 = arith.constant 0 : i32
    %c0_i32_0 = arith.constant 0 : i32
    %c0_i32_1 = arith.constant 0 : i32
    return %c0_i32, %c0_i32_0 : i32, i32
  }
  func.func @transform_3(%arg0: i32) -> (i32, i32) {
    %c0_i32 = arith.constant 0 : i32
    %c0_i32_0 = arith.constant 0 : i32
    %c0_i32_1 = arith.constant 0 : i32
    return %c0_i32, %c0_i32_0 : i32, i32
  }
  func.func @transform_4(%arg0: i32) -> (i32, i32) {
    %c0_i32 = arith.constant 0 : i32
    %c0_i32_0 = arith.constant 0 : i32
    %c0_i32_1 = arith.constant 0 : i32
    return %c0_i32, %c0_i32_0 : i32, i32
  }
  func.func @transform_5(%arg0: i32) -> (i32, i32) {
    %c0_i32 = arith.constant 0 : i32
    %c0_i32_0 = arith.constant 0 : i32
    %c0_i32_1 = arith.constant 0 : i32
    return %c0_i32, %c0_i32_0 : i32, i32
  }
  func.func @transform_6(%arg0: i32) -> (i32, i32) {
    %c0_i32 = arith.constant 0 : i32
    %c0_i32_0 = arith.constant 0 : i32
    %c0_i32_1 = arith.constant 0 : i32
    return %c0_i32, %c0_i32_0 : i32, i32
  }
  func.func @transform_7(%arg0: i32) -> (i32, i32) {
    %c0_i32 = arith.constant 0 : i32
    %c0_i32_0 = arith.constant 0 : i32
    %c0_i32_1 = arith.constant 0 : i32
    return %c0_i32, %c0_i32_0 : i32, i32
  }
  func.func @transform_8(%arg0: i32) -> (i32, i32) {
    %c0_i32 = arith.constant 0 : i32
    %c0_i32_0 = arith.constant 0 : i32
    %c0_i32_1 = arith.constant 0 : i32
    return %c0_i32, %c0_i32_0 : i32, i32
  }
  func.func @transform_9(%arg0: i32) -> (i32, i32) {
    %c0_i32 = arith.constant 0 : i32
    %c0_i32_0 = arith.constant 0 : i32
    %c0_i32_1 = arith.constant 0 : i32
    return %c0_i32, %c0_i32_0 : i32, i32
  }
  func.func @transform_10(%arg0: i32) -> (i32, i32) {
    %c0_i32 = arith.constant 0 : i32
    %c0_i32_0 = arith.constant 0 : i32
    %c0_i32_1 = arith.constant 0 : i32
    return %c0_i32, %c0_i32_0 : i32, i32
  }
  func.func @transform_11(%arg0: i32) -> (i32, i32) {
    %c0_i32 = arith.constant 0 : i32
    %c0_i32_0 = arith.constant 0 : i32
    %c0_i32_1 = arith.constant 0 : i32
    return %c0_i32, %c0_i32_0 : i32, i32
  }
  func.func @transform_12(%arg0: i32) -> (i32, i32) {
    %c0_i32 = arith.constant 0 : i32
    %c0_i32_0 = arith.constant 0 : i32
    %c0_i32_1 = arith.constant 0 : i32
    return %c0_i32, %c0_i32_0 : i32, i32
  }
  func.func @transform_13(%arg0: i32) -> (i32, i32) {
    %c0_i32 = arith.constant 0 : i32
    %c0_i32_0 = arith.constant 0 : i32
    return %arg0, %c0_i32 : i32, i32
  }
}

</mosaic_0001>

<llo_original>
// kernel: _forward_impl.1
$region0: #{_forward_impl.1}
  #allocation0 [shape = 'u32[]', space=smem, size = 0x4, offset = 0x4, fixed_abs, tag = 'smem constant byte address 0x4 - core index']
  #allocation1 [shape = 'u32[144,128]{1,0:T(1,128)}', space=vmem, size = 0x12000, scoped, tag = 'internal scratch']
  %s0 = inlined_call_operand.vmem [shape: f32[8,256], index: 0, kind: input, shape index: {}]
  %s1 = inlined_call_operand.vmem [shape: f32[8,512], index: 1, kind: input, shape index: {}]
  %s2 = inlined_call_operand.vmem [shape: f32[256,32], index: 2, kind: input, shape index: {}]
  %s3 = inlined_call_operand.vmem [shape: f32[1,32], index: 3, kind: input, shape index: {}]
  %s4 = inlined_call_operand.vmem [shape: f32[512,32], index: 4, kind: input, shape index: {}]
  %s5 = inlined_call_operand.vmem [shape: f32[1,32], index: 5, kind: input, shape index: {}]
  %s6 = inlined_call_operand.vmem [shape: f32[32,32], index: 6, kind: input, shape index: {}]
  %s7 = inlined_call_operand.vmem [shape: f32[32,32], index: 7, kind: input, shape index: {}]
  %s8 = inlined_call_operand.vmem [shape: f32[1,32], index: 8, kind: input, shape index: {}]
  %s9 = inlined_call_operand.vmem [shape: f32[32,16], index: 9, kind: input, shape index: {}]
  %s10 = inlined_call_operand.vmem [shape: f32[1,16], index: 10, kind: input, shape index: {}]
  %s11 = inlined_call_operand.vmem [shape: f32[16,128], index: 11, kind: input, shape index: {}]
  %s12 = inlined_call_operand.vmem [shape: f32[1,128], index: 12, kind: input, shape index: {}]
  %s13 = inlined_call_operand.vmem [shape: f32[8,128], index: 13, kind: output, shape index: {}]
  %s14 = sld [smem:[#allocation0]]
  $region62: #{_forward_impl.1} parent=0
    _
  %s16 = ssub.s32 1, %s14
  %s17 = scalar_select 0, %s16, %s14
  // Predicated region
  $region2: #{_forward_impl.1} parent=0 // pred_check
    _
  $region3: #{_forward_impl.1} parent=0 // pred_check_branch
    %19 = sbr.rel (0) target = $region5
  $region4: #{_forward_impl.1} parent=0 // pred_region
    _
  $region5: #{_forward_impl.1} parent=0 // pred_fallthru
    _
  // Predicated region
  $region6: #{_forward_impl.1} parent=0 // pred_check
    _
  $region7: #{_forward_impl.1} parent=0 // pred_check_branch
    %21 = sbr.rel (0) target = $region9
  $region8: #{_forward_impl.1} parent=0 // pred_region
    _
  $region9: #{_forward_impl.1} parent=0 // pred_fallthru
    _
  // Predicated region
  $region10: #{_forward_impl.1} parent=0 // pred_check
    _
  $region11: #{_forward_impl.1} parent=0 // pred_check_branch
    %23 = sbr.rel (0) target = $region13
  $region12: #{_forward_impl.1} parent=0 // pred_region
    _
  $region13: #{_forward_impl.1} parent=0 // pred_fallthru
    _
  // Predicated region
  $region14: #{_forward_impl.1} parent=0 // pred_check
    _
  $region15: #{_forward_impl.1} parent=0 // pred_check_branch
    %25 = sbr.rel (0) target = $region17
  $region16: #{_forward_impl.1} parent=0 // pred_region
    _
  $region17: #{_forward_impl.1} parent=0 // pred_fallthru
    _
  // Predicated region
  $region18: #{_forward_impl.1} parent=0 // pred_check
    _
  $region19: #{_forward_impl.1} parent=0 // pred_check_branch
    %27 = sbr.rel (0) target = $region21
  $region20: #{_forward_impl.1} parent=0 // pred_region
    _
  $region21: #{_forward_impl.1} parent=0 // pred_fallthru
    _
  // Predicated region
  $region22: #{_forward_impl.1} parent=0 // pred_check
    _
  $region23: #{_forward_impl.1} parent=0 // pred_check_branch
    %29 = sbr.rel (0) target = $region25
  $region24: #{_forward_impl.1} parent=0 // pred_region
    _
  $region25: #{_forward_impl.1} parent=0 // pred_fallthru
    _
  // Predicated region
  $region26: #{_forward_impl.1} parent=0 // pred_check
    _
  $region27: #{_forward_impl.1} parent=0 // pred_check_branch
    %31 = sbr.rel (0) target = $region29
  $region28: #{_forward_impl.1} parent=0 // pred_region
    _
  $region29: #{_forward_impl.1} parent=0 // pred_fallthru
    _
  // Predicated region
  $region30: #{_forward_impl.1} parent=0 // pred_check
    _
  $region31: #{_forward_impl.1} parent=0 // pred_check_branch
    %33 = sbr.rel (0) target = $region33
  $region32: #{_forward_impl.1} parent=0 // pred_region
    _
  $region33: #{_forward_impl.1} parent=0 // pred_fallthru
    _
  // Predicated region
  $region34: #{_forward_impl.1} parent=0 // pred_check
    _
  $region35: #{_forward_impl.1} parent=0 // pred_check_branch
    %35 = sbr.rel (0) target = $region37
  $region36: #{_forward_impl.1} parent=0 // pred_region
    _
  $region37: #{_forward_impl.1} parent=0 // pred_fallthru
    _
  // Predicated region
  $region38: #{_forward_impl.1} parent=0 // pred_check
    _
  $region39: #{_forward_impl.1} parent=0 // pred_check_branch
    %37 = sbr.rel (0) target = $region41
  $region40: #{_forward_impl.1} parent=0 // pred_region
    _
  $region41: #{_forward_impl.1} parent=0 // pred_fallthru
    _
  // Predicated region
  $region42: #{_forward_impl.1} parent=0 // pred_check
    _
  $region43: #{_forward_impl.1} parent=0 // pred_check_branch
    %39 = sbr.rel (0) target = $region45
  $region44: #{_forward_impl.1} parent=0 // pred_region
    _
  $region45: #{_forward_impl.1} parent=0 // pred_fallthru
    _
  // Predicated region
  $region46: #{_forward_impl.1} parent=0 // pred_check
    _
  $region47: #{_forward_impl.1} parent=0 // pred_check_branch
    %41 = sbr.rel (0) target = $region49
  $region48: #{_forward_impl.1} parent=0 // pred_region
    _
  $region49: #{_forward_impl.1} parent=0 // pred_fallthru
    _
  // Predicated region
  $region50: #{_forward_impl.1} parent=0 // pred_check
    _
  $region51: #{_forward_impl.1} parent=0 // pred_check_branch
    %43 = sbr.rel (0) target = $region53
  $region52: #{_forward_impl.1} parent=0 // pred_region
    _
  $region53: #{_forward_impl.1} parent=0 // pred_fallthru
    _
  %v44 = vld [vmem:[%s0] sm:$0xff]
  %v45 = vld [vmem:[%s0 + $0x8] sm:$0xff]
  %v46 = vld [vmem:[%s2] sm:$0xff]
  %v47 = vld [vmem:[%s2 + $0x8] sm:$0xff]
  %v48 = vld [vmem:[%s2 + $0x10] sm:$0xff]
  %v49 = vld [vmem:[%s2 + $0x18] sm:$0xff]
  %v50 = vld [vmem:[%s2 + $0x20] sm:$0xff]
  %v51 = vld [vmem:[%s2 + $0x28] sm:$0xff]
  %v52 = vld [vmem:[%s2 + $0x30] sm:$0xff]
  %v53 = vld [vmem:[%s2 + $0x38] sm:$0xff]
  %v54 = vld [vmem:[%s2 + $0x40] sm:$0xff]
  %v55 = vld [vmem:[%s2 + $0x48] sm:$0xff]
  %v56 = vld [vmem:[%s2 + $0x50] sm:$0xff]
  %v57 = vld [vmem:[%s2 + $0x58] sm:$0xff]
  %v58 = vld [vmem:[%s2 + $0x60] sm:$0xff]
  %v59 = vld [vmem:[%s2 + $0x68] sm:$0xff]
  %v60 = vld [vmem:[%s2 + $0x70] sm:$0xff]
  %v61 = vld [vmem:[%s2 + $0x78] sm:$0xff]
  %v62 = vld [vmem:[%s2 + $0x80] sm:$0xff]
  %v63 = vld [vmem:[%s2 + $0x88] sm:$0xff]
  %v64 = vld [vmem:[%s2 + $0x90] sm:$0xff]
  %v65 = vld [vmem:[%s2 + $0x98] sm:$0xff]
  %v66 = vld [vmem:[%s2 + $0xa0] sm:$0xff]
  %v67 = vld [vmem:[%s2 + $0xa8] sm:$0xff]
  %v68 = vld [vmem:[%s2 + $0xb0] sm:$0xff]
  %v69 = vld [vmem:[%s2 + $0xb8] sm:$0xff]
  %v70 = vld [vmem:[%s2 + $0xc0] sm:$0xff]
  %v71 = vld [vmem:[%s2 + $0xc8] sm:$0xff]
  %v72 = vld [vmem:[%s2 + $0xd0] sm:$0xff]
  %v73 = vld [vmem:[%s2 + $0xd8] sm:$0xff]
  %v74 = vld [vmem:[%s2 + $0xe0] sm:$0xff]
  %v75 = vld [vmem:[%s2 + $0xe8] sm:$0xff]
  %v76 = vld [vmem:[%s2 + $0xf0] sm:$0xff]
  %v77 = vld [vmem:[%s2 + $0xf8] sm:$0xff]
  %v78 = vld [vmem:[%s3] sm:$0x1]
  %v80 = vlaneseq
  %v81 = vshrl.u32 %v80, 7
  %v82 = vsub.s32 0, %v81
  %v83 = vrot.slane %v78, %v82
  %85 = vmatprep.subr.mxu0 0.0
  %86 = vmatpush1.msra.mxu0 %v46
  %87 = vmatprep.subr.mxu0 0.0
  %88 = vmatpush1.msra.mxu0 %v47
  %89 = vmatprep.subr.mxu0 0.0
  %90 = vmatpush1.msra.mxu0 %v48
  %91 = vmatprep.subr.mxu0 0.0
  %92 = vmatpush1.msra.mxu0 %v49
  %93 = vmatprep.subr.mxu0 0.0
  %94 = vmatpush1.msra.mxu0 %v50
  %95 = vmatprep.subr.mxu0 0.0
  %96 = vmatpush1.msra.mxu0 %v51
  %97 = vmatprep.subr.mxu0 0.0
  %98 = vmatpush1.msra.mxu0 %v52
  %99 = vmatprep.subr.mxu0 0.0
  %100 = vmatpush1.msra.mxu0 %v53
  %101 = vmatprep.subr.mxu0 0.0
  %102 = vmatpush1.msra.mxu0 %v54
  %103 = vmatprep.subr.mxu0 0.0
  %104 = vmatpush1.msra.mxu0 %v55
  %105 = vmatprep.subr.mxu0 0.0
  %106 = vmatpush1.msra.mxu0 %v56
  %107 = vmatprep.subr.mxu0 0.0
  %108 = vmatpush1.msra.mxu0 %v57
  %109 = vmatprep.subr.mxu0 0.0
  %110 = vmatpush1.msra.mxu0 %v58
  %111 = vmatprep.subr.mxu0 0.0
  %112 = vmatpush1.msra.mxu0 %v59
  %113 = vmatprep.subr.mxu0 0.0
  %114 = vmatpush1.msra.mxu0 %v60
  %115 = vmatprep.subr.mxu0 0.0
  %116 = vmatpush1.msra.mxu0 %v61
  %117 = vmatprep.subr.mxu0 0.0
  %118 = vmatpush1.msra.mxu0 %v62
  %119 = vmatprep.subr.mxu0 0.0
  %120 = vmatpush1.msra.mxu0 %v63
  %121 = vmatprep.subr.mxu0 0.0
  %122 = vmatpush1.msra.mxu0 %v64
  %123 = vmatprep.subr.mxu0 0.0
  %124 = vmatpush1.msra.mxu0 %v65
  %125 = vmatprep.subr.mxu0 0.0
  %126 = vmatpush1.msra.mxu0 %v66
  %127 = vmatprep.subr.mxu0 0.0
  %128 = vmatpush1.msra.mxu0 %v67
  %129 = vmatprep.subr.mxu0 0.0
  %130 = vmatpush1.msra.mxu0 %v68
  %131 = vmatprep.subr.mxu0 0.0
  %132 = vmatpush1.msra.mxu0 %v69
  %133 = vmatprep.subr.mxu0 0.0
  %134 = vmatpush1.msra.mxu0 %v70
  %135 = vmatprep.subr.mxu0 0.0
  %136 = vmatpush1.msra.mxu0 %v71
  %137 = vmatprep.subr.mxu0 0.0
  %138 = vmatpush1.msra.mxu0 %v72
  %139 = vmatprep.subr.mxu0 0.0
  %140 = vmatpush1.msra.mxu0 %v73
  %141 = vmatprep.subr.mxu0 0.0
  %142 = vmatpush1.msra.mxu0 %v74
  %143 = vmatprep.subr.mxu0 0.0
  %144 = vmatpush1.msra.mxu0 %v75
  %145 = vmatprep.subr.mxu0 0.0
  %146 = vmatpush1.msra.mxu0 %v76
  %147 = vmatprep.subr.mxu0 0.0
  %148 = vmatpush1.msra.mxu0 %v77
  %149 = vmatprep.mubr.f32.mxu0 %v45
  %150 = vmatmul.mubr.f32.gmra.mrb[0].mxu0 %v44
  %v151 = vpop.f32.mrb[0].mxu0
  %v152 = vadd.f32 %v83, %v151
  %v153 = vpop.f32.mrb[0].mxu0
  %154 = vdwg.mxu0
  %v155 = vld [vmem:[%s1] sm:$0xff]
  %v156 = vld [vmem:[%s1 + $0x8] sm:$0xff]
  %v157 = vld [vmem:[%s1 + $0x10] sm:$0xff]
  %v158 = vld [vmem:[%s1 + $0x18] sm:$0xff]
  %v159 = vld [vmem:[%s4] sm:$0xff]
  %v160 = vld [vmem:[%s4 + $0x8] sm:$0xff]
  %v161 = vld [vmem:[%s4 + $0x10] sm:$0xff]
  %v162 = vld [vmem:[%s4 + $0x18] sm:$0xff]
  %v163 = vld [vmem:[%s4 + $0x20] sm:$0xff]
  %v164 = vld [vmem:[%s4 + $0x28] sm:$0xff]
  %v165 = vld [vmem:[%s4 + $0x30] sm:$0xff]
  %v166 = vld [vmem:[%s4 + $0x38] sm:$0xff]
  %v167 = vld [vmem:[%s4 + $0x40] sm:$0xff]
  %v168 = vld [vmem:[%s4 + $0x48] sm:$0xff]
  %v169 = vld [vmem:[%s4 + $0x50] sm:$0xff]
  %v170 = vld [vmem:[%s4 + $0x58] sm:$0xff]
  %v171 = vld [vmem:[%s4 + $0x60] sm:$0xff]
  %v172 = vld [vmem:[%s4 + $0x68] sm:$0xff]
  %v173 = vld [vmem:[%s4 + $0x70] sm:$0xff]
  %v174 = vld [vmem:[%s4 + $0x78] sm:$0xff]
  %v175 = vld [vmem:[%s4 + $0x80] sm:$0xff]
  %v176 = vld [vmem:[%s4 + $0x88] sm:$0xff]
  %v177 = vld [vmem:[%s4 + $0x90] sm:$0xff]
  %v178 = vld [vmem:[%s4 + $0x98] sm:$0xff]
  %v179 = vld [vmem:[%s4 + $0xa0] sm:$0xff]
  %v180 = vld [vmem:[%s4 + $0xa8] sm:$0xff]
  %v181 = vld [vmem:[%s4 + $0xb0] sm:$0xff]
  %v182 = vld [vmem:[%s4 + $0xb8] sm:$0xff]
  %v183 = vld [vmem:[%s4 + $0xc0] sm:$0xff]
  %v184 = vld [vmem:[%s4 + $0xc8] sm:$0xff]
  %v185 = vld [vmem:[%s4 + $0xd0] sm:$0xff]
  %v186 = vld [vmem:[%s4 + $0xd8] sm:$0xff]
  %v187 = vld [vmem:[%s4 + $0xe0] sm:$0xff]
  %v188 = vld [vmem:[%s4 + $0xe8] sm:$0xff]
  %v189 = vld [vmem:[%s4 + $0xf0] sm:$0xff]
  %v190 = vld [vmem:[%s4 + $0xf8] sm:$0xff]
  %v191 = vld [vmem:[%s4 + $0x100] sm:$0xff]
  %v192 = vld [vmem:[%s4 + $0x108] sm:$0xff]
  %v193 = vld [vmem:[%s4 + $0x110] sm:$0xff]
  %v194 = vld [vmem:[%s4 + $0x118] sm:$0xff]
  %v195 = vld [vmem:[%s4 + $0x120] sm:$0xff]
  %v196 = vld [vmem:[%s4 + $0x128] sm:$0xff]
  %v197 = vld [vmem:[%s4 + $0x130] sm:$0xff]
  %v198 = vld [vmem:[%s4 + $0x138] sm:$0xff]
  %v199 = vld [vmem:[%s4 + $0x140] sm:$0xff]
  %v200 = vld [vmem:[%s4 + $0x148] sm:$0xff]
  %v201 = vld [vmem:[%s4 + $0x150] sm:$0xff]
  %v202 = vld [vmem:[%s4 + $0x158] sm:$0xff]
  %v203 = vld [vmem:[%s4 + $0x160] sm:$0xff]
  %v204 = vld [vmem:[%s4 + $0x168] sm:$0xff]
  %v205 = vld [vmem:[%s4 + $0x170] sm:$0xff]
  %v206 = vld [vmem:[%s4 + $0x178] sm:$0xff]
  %v207 = vld [vmem:[%s4 + $0x180] sm:$0xff]
  %v208 = vld [vmem:[%s4 + $0x188] sm:$0xff]
  %v209 = vld [vmem:[%s4 + $0x190] sm:$0xff]
  %v210 = vld [vmem:[%s4 + $0x198] sm:$0xff]
  %v211 = vld [vmem:[%s4 + $0x1a0] sm:$0xff]
  %v212 = vld [vmem:[%s4 + $0x1a8] sm:$0xff]
  %v213 = vld [vmem:[%s4 + $0x1b0] sm:$0xff]
  %v214 = vld [vmem:[%s4 + $0x1b8] sm:$0xff]
  %v215 = vld [vmem:[%s4 + $0x1c0] sm:$0xff]
  %v216 = vld [vmem:[%s4 + $0x1c8] sm:$0xff]
  %v217 = vld [vmem:[%s4 + $0x1d0] sm:$0xff]
  %v218 = vld [vmem:[%s4 + $0x1d8] sm:$0xff]
  %v219 = vld [vmem:[%s4 + $0x1e0] sm:$0xff]
  %v220 = vld [vmem:[%s4 + $0x1e8] sm:$0xff]
  %v221 = vld [vmem:[%s4 + $0x1f0] sm:$0xff]
  %v222 = vld [vmem:[%s4 + $0x1f8] sm:$0xff]
  %v223 = vld [vmem:[%s5] sm:$0x1]
  %v225 = vlaneseq
  %v226 = vshrl.u32 %v225, 7
  %v227 = vsub.s32 0, %v226
  %v228 = vrot.slane %v223, %v227
  %230 = vmatprep.subr.mxu0 0.0
  %231 = vmatpush1.msra.mxu0 %v159
  %232 = vmatprep.subr.mxu0 0.0
  %233 = vmatpush1.msra.mxu0 %v160
  %234 = vmatprep.subr.mxu0 0.0
  %235 = vmatpush1.msra.mxu0 %v161
  %236 = vmatprep.subr.mxu0 0.0
  %237 = vmatpush1.msra.mxu0 %v162
  %238 = vmatprep.subr.mxu0 0.0
  %239 = vmatpush1.msra.mxu0 %v163
  %240 = vmatprep.subr.mxu0 0.0
  %241 = vmatpush1.msra.mxu0 %v164
  %242 = vmatprep.subr.mxu0 0.0
  %243 = vmatpush1.msra.mxu0 %v165
  %244 = vmatprep.subr.mxu0 0.0
  %245 = vmatpush1.msra.mxu0 %v166
  %246 = vmatprep.subr.mxu0 0.0
  %247 = vmatpush1.msra.mxu0 %v167
  %248 = vmatprep.subr.mxu0 0.0
  %249 = vmatpush1.msra.mxu0 %v168
  %250 = vmatprep.subr.mxu0 0.0
  %251 = vmatpush1.msra.mxu0 %v169
  %252 = vmatprep.subr.mxu0 0.0
  %253 = vmatpush1.msra.mxu0 %v170
  %254 = vmatprep.subr.mxu0 0.0
  %255 = vmatpush1.msra.mxu0 %v171
  %256 = vmatprep.subr.mxu0 0.0
  %257 = vmatpush1.msra.mxu0 %v172
  %258 = vmatprep.subr.mxu0 0.0
  %259 = vmatpush1.msra.mxu0 %v173
  %260 = vmatprep.subr.mxu0 0.0
  %261 = vmatpush1.msra.mxu0 %v174
  %262 = vmatprep.subr.mxu0 0.0
  %263 = vmatpush1.msra.mxu0 %v175
  %264 = vmatprep.subr.mxu0 0.0
  %265 = vmatpush1.msra.mxu0 %v176
  %266 = vmatprep.subr.mxu0 0.0
  %267 = vmatpush1.msra.mxu0 %v177
  %268 = vmatprep.subr.mxu0 0.0
  %269 = vmatpush1.msra.mxu0 %v178
  %270 = vmatprep.subr.mxu0 0.0
  %271 = vmatpush1.msra.mxu0 %v179
  %272 = vmatprep.subr.mxu0 0.0
  %273 = vmatpush1.msra.mxu0 %v180
  %274 = vmatprep.subr.mxu0 0.0
  %275 = vmatpush1.msra.mxu0 %v181
  %276 = vmatprep.subr.mxu0 0.0
  %277 = vmatpush1.msra.mxu0 %v182
  %278 = vmatprep.subr.mxu0 0.0
  %279 = vmatpush1.msra.mxu0 %v183
  %280 = vmatprep.subr.mxu0 0.0
  %281 = vmatpush1.msra.mxu0 %v184
  %282 = vmatprep.subr.mxu0 0.0
  %283 = vmatpush1.msra.mxu0 %v185
  %284 = vmatprep.subr.mxu0 0.0
  %285 = vmatpush1.msra.mxu0 %v186
  %286 = vmatprep.subr.mxu0 0.0
  %287 = vmatpush1.msra.mxu0 %v187
  %288 = vmatprep.subr.mxu0 0.0
  %289 = vmatpush1.msra.mxu0 %v188
  %290 = vmatprep.subr.mxu0 0.0
  %291 = vmatpush1.msra.mxu0 %v189
  %292 = vmatprep.subr.mxu0 0.0
  %293 = vmatpush1.msra.mxu0 %v190
  %294 = vmatprep.mubr.f32.mxu0 %v156
  %295 = vmatmul.mubr.f32.gmra.mrb[0].mxu0 %v155
  %v296 = vpop.f32.mrb[0].mxu0
  %v297 = vadd.f32 %v228, %v296
  %v298 = vpop.f32.mrb[0].mxu0
  %299 = vdwg.mxu0
  %300 = vmatprep.subr.mxu0 0.0
  %301 = vmatpush1.msra.mxu0 %v191
  %302 = vmatprep.subr.mxu0 0.0
  %303 = vmatpush1.msra.mxu0 %v192
  %304 = vmatprep.subr.mxu0 0.0
  %305 = vmatpush1.msra.mxu0 %v193
  %306 = vmatprep.subr.mxu0 0.0
  %307 = vmatpush1.msra.mxu0 %v194
  %308 = vmatprep.subr.mxu0 0.0
  %309 = vmatpush1.msra.mxu0 %v195
  %310 = vmatprep.subr.mxu0 0.0
  %311 = vmatpush1.msra.mxu0 %v196
  %312 = vmatprep.subr.mxu0 0.0
  %313 = vmatpush1.msra.mxu0 %v197
  %314 = vmatprep.subr.mxu0 0.0
  %315 = vmatpush1.msra.mxu0 %v198
  %316 = vmatprep.subr.mxu0 0.0
  %317 = vmatpush1.msra.mxu0 %v199
  %318 = vmatprep.subr.mxu0 0.0
  %319 = vmatpush1.msra.mxu0 %v200
  %320 = vmatprep.subr.mxu0 0.0
  %321 = vmatpush1.msra.mxu0 %v201
  %322 = vmatprep.subr.mxu0 0.0
  %323 = vmatpush1.msra.mxu0 %v202
  %324 = vmatprep.subr.mxu0 0.0
  %325 = vmatpush1.msra.mxu0 %v203
  %326 = vmatprep.subr.mxu0 0.0
  %327 = vmatpush1.msra.mxu0 %v204
  %328 = vmatprep.subr.mxu0 0.0
  %329 = vmatpush1.msra.mxu0 %v205
  %330 = vmatprep.subr.mxu0 0.0
  %331 = vmatpush1.msra.mxu0 %v206
  %332 = vmatprep.subr.mxu0 0.0
  %333 = vmatpush1.msra.mxu0 %v207
  %334 = vmatprep.subr.mxu0 0.0
  %335 = vmatpush1.msra.mxu0 %v208
  %336 = vmatprep.subr.mxu0 0.0
  %337 = vmatpush1.msra.mxu0 %v209
  %338 = vmatprep.subr.mxu0 0.0
  %339 = vmatpush1.msra.mxu0 %v210
  %340 = vmatprep.subr.mxu0 0.0
  %341 = vmatpush1.msra.mxu0 %v211
  %342 = vmatprep.subr.mxu0 0.0
  %343 = vmatpush1.msra.mxu0 %v212
  %344 = vmatprep.subr.mxu0 0.0
  %345 = vmatpush1.msra.mxu0 %v213
  %346 = vmatprep.subr.mxu0 0.0
  %347 = vmatpush1.msra.mxu0 %v214
  %348 = vmatprep.subr.mxu0 0.0
  %349 = vmatpush1.msra.mxu0 %v215
  %350 = vmatprep.subr.mxu0 0.0
  %351 = vmatpush1.msra.mxu0 %v216
  %352 = vmatprep.subr.mxu0 0.0
  %353 = vmatpush1.msra.mxu0 %v217
  %354 = vmatprep.subr.mxu0 0.0
  %355 = vmatpush1.msra.mxu0 %v218
  %356 = vmatprep.subr.mxu0 0.0
  %357 = vmatpush1.msra.mxu0 %v219
  %358 = vmatprep.subr.mxu0 0.0
  %359 = vmatpush1.msra.mxu0 %v220
  %360 = vmatprep.subr.mxu0 0.0
  %361 = vmatpush1.msra.mxu0 %v221
  %362 = vmatprep.subr.mxu0 0.0
  %363 = vmatpush1.msra.mxu0 %v222
  %364 = vmatprep.mubr.f32.mxu0 %v158
  %365 = vmatmul.mubr.f32.gmra.mrb[0].mxu0 %v157
  %v366 = vpop.f32.mrb[0].mxu0
  %v367 = vadd.f32 %v297, %v366
  %v368 = vpop.f32.mrb[0].mxu0
  %369 = vdwg.mxu0
  %v370 = vld [vmem:[%s6] sm:$0xff]
  %v371 = vld [vmem:[%s6 + $0x8] sm:$0xff]
  %v372 = vld [vmem:[%s6 + $0x10] sm:$0xff]
  %v373 = vld [vmem:[%s6 + $0x18] sm:$0xff]
  %v374 = vld [vmem:[%s7] sm:$0xff]
  %v375 = vld [vmem:[%s7 + $0x8] sm:$0xff]
  %v376 = vld [vmem:[%s7 + $0x10] sm:$0xff]
  %v377 = vld [vmem:[%s7 + $0x18] sm:$0xff]
  %vm378 = vcmask 261120
  %v380 = vsel %vm378, %v152, 0
  %382 = vmatprep.subr.mxu0 0.0
  %383 = vmatpush1.msra.mxu0 %v374
  %384 = vmatprep.subr.mxu0 0.0
  %385 = vmatpush1.msra.mxu0 %v375
  %386 = vmatprep.subr.mxu0 0.0
  %387 = vmatpush1.msra.mxu0 %v376
  %388 = vmatprep.subr.mxu0 0.0
  %389 = vmatpush1.msra.mxu0 %v377
  %390 = vmatprep.subr.mxu0 0.0
  %391 = vmatpush1.msra.mxu0 0.0
  %392 = vmatprep.subr.mxu0 0.0
  %393 = vmatpush1.msra.mxu0 0.0
  %394 = vmatprep.subr.mxu0 0.0
  %395 = vmatpush1.msra.mxu0 0.0
  %396 = vmatprep.subr.mxu0 0.0
  %397 = vmatpush1.msra.mxu0 0.0
  %398 = vmatprep.subr.mxu0 0.0
  %399 = vmatpush1.msra.mxu0 0.0
  %400 = vmatprep.subr.mxu0 0.0
  %401 = vmatpush1.msra.mxu0 0.0
  %402 = vmatprep.subr.mxu0 0.0
  %403 = vmatpush1.msra.mxu0 0.0
  %404 = vmatprep.subr.mxu0 0.0
  %405 = vmatpush1.msra.mxu0 0.0
  %406 = vmatprep.subr.mxu0 0.0
  %407 = vmatpush1.msra.mxu0 0.0
  %408 = vmatprep.subr.mxu0 0.0
  %409 = vmatpush1.msra.mxu0 0.0
  %410 = vmatprep.subr.mxu0 0.0
  %411 = vmatpush1.msra.mxu0 0.0
  %412 = vmatprep.subr.mxu0 0.0
  %413 = vmatpush1.msra.mxu0 0.0
  %414 = vmatprep.subr.mxu0 0.0
  %415 = vmatpush1.msra.mxu0 0.0
  %416 = vmatprep.subr.mxu0 0.0
  %417 = vmatpush1.msra.mxu0 0.0
  %418 = vmatprep.subr.mxu0 0.0
  %419 = vmatpush1.msra.mxu0 0.0
  %420 = vmatprep.subr.mxu0 0.0
  %421 = vmatpush1.msra.mxu0 0.0
  %422 = vmatprep.subr.mxu0 0.0
  %423 = vmatpush1.msra.mxu0 0.0
  %424 = vmatprep.subr.mxu0 0.0
  %425 = vmatpush1.msra.mxu0 0.0
  %426 = vmatprep.subr.mxu0 0.0
  %427 = vmatpush1.msra.mxu0 0.0
  %428 = vmatprep.subr.mxu0 0.0
  %429 = vmatpush1.msra.mxu0 0.0
  %430 = vmatprep.subr.mxu0 0.0
  %431 = vmatpush1.msra.mxu0 0.0
  %432 = vmatprep.subr.mxu0 0.0
  %433 = vmatpush1.msra.mxu0 0.0
  %434 = vmatprep.subr.mxu0 0.0
  %435 = vmatpush1.msra.mxu0 0.0
  %436 = vmatprep.subr.mxu0 0.0
  %437 = vmatpush1.msra.mxu0 0.0
  %438 = vmatprep.subr.mxu0 0.0
  %439 = vmatpush1.msra.mxu0 0.0
  %440 = vmatprep.subr.mxu0 0.0
  %441 = vmatpush1.msra.mxu0 0.0
  %442 = vmatprep.subr.mxu0 0.0
  %443 = vmatpush1.msra.mxu0 0.0
  %444 = vmatprep.subr.mxu0 0.0
  %445 = vmatpush1.msra.mxu0 0.0
  %446 = vmatprep.mubr.f32.mxu0 0.0
  %447 = vmatmul.mubr.f32.gmra.mrb[0].mxu0 %v380
  %v448 = vpop.f32.mrb[0].mxu0
  %v449 = vadd.f32 0.0, %v448
  %v450 = vpop.f32.mrb[0].mxu0
  %451 = vdwg.mxu0
  %v453 = vsel %vm378, %v367, 0
  %455 = vmatprep.subr.mxu0 0.0
  %456 = vmatpush1.msra.mxu0 %v370
  %457 = vmatprep.subr.mxu0 0.0
  %458 = vmatpush1.msra.mxu0 %v371
  %459 = vmatprep.subr.mxu0 0.0
  %460 = vmatpush1.msra.mxu0 %v372
  %461 = vmatprep.subr.mxu0 0.0
  %462 = vmatpush1.msra.mxu0 %v373
  %463 = vmatprep.subr.mxu0 0.0
  %464 = vmatpush1.msra.mxu0 0.0
  %465 = vmatprep.subr.mxu0 0.0
  %466 = vmatpush1.msra.mxu0 0.0
  %467 = vmatprep.subr.mxu0 0.0
  %468 = vmatpush1.msra.mxu0 0.0
  %469 = vmatprep.subr.mxu0 0.0
  %470 = vmatpush1.msra.mxu0 0.0
  %471 = vmatprep.subr.mxu0 0.0
  %472 = vmatpush1.msra.mxu0 0.0
  %473 = vmatprep.subr.mxu0 0.0
  %474 = vmatpush1.msra.mxu0 0.0
  %475 = vmatprep.subr.mxu0 0.0
  %476 = vmatpush1.msra.mxu0 0.0
  %477 = vmatprep.subr.mxu0 0.0
  %478 = vmatpush1.msra.mxu0 0.0
  %479 = vmatprep.subr.mxu0 0.0
  %480 = vmatpush1.msra.mxu0 0.0
  %481 = vmatprep.subr.mxu0 0.0
  %482 = vmatpush1.msra.mxu0 0.0
  %483 = vmatprep.subr.mxu0 0.0
  %484 = vmatpush1.msra.mxu0 0.0
  %485 = vmatprep.subr.mxu0 0.0
  %486 = vmatpush1.msra.mxu0 0.0
  %487 = vmatprep.subr.mxu0 0.0
  %488 = vmatpush1.msra.mxu0 0.0
  %489 = vmatprep.subr.mxu0 0.0
  %490 = vmatpush1.msra.mxu0 0.0
  %491 = vmatprep.subr.mxu0 0.0
  %492 = vmatpush1.msra.mxu0 0.0
  %493 = vmatprep.subr.mxu0 0.0
  %494 = vmatpush1.msra.mxu0 0.0
  %495 = vmatprep.subr.mxu0 0.0
  %496 = vmatpush1.msra.mxu0 0.0
  %497 = vmatprep.subr.mxu0 0.0
  %498 = vmatpush1.msra.mxu0 0.0
  %499 = vmatprep.subr.mxu0 0.0
  %500 = vmatpush1.msra.mxu0 0.0
  %501 = vmatprep.subr.mxu0 0.0
  %502 = vmatpush1.msra.mxu0 0.0
  %503 = vmatprep.subr.mxu0 0.0
  %504 = vmatpush1.msra.mxu0 0.0
  %505 = vmatprep.subr.mxu0 0.0
  %506 = vmatpush1.msra.mxu0 0.0
  %507 = vmatprep.subr.mxu0 0.0
  %508 = vmatpush1.msra.mxu0 0.0
  %509 = vmatprep.subr.mxu0 0.0
  %510 = vmatpush1.msra.mxu0 0.0
  %511 = vmatprep.subr.mxu0 0.0
  %512 = vmatpush1.msra.mxu0 0.0
  %513 = vmatprep.subr.mxu0 0.0
  %514 = vmatpush1.msra.mxu0 0.0
  %515 = vmatprep.subr.mxu0 0.0
  %516 = vmatpush1.msra.mxu0 0.0
  %517 = vmatprep.subr.mxu0 0.0
  %518 = vmatpush1.msra.mxu0 0.0
  %519 = vmatprep.mubr.f32.mxu0 0.0
  %520 = vmatmul.mubr.f32.gmra.mrb[0].mxu0 %v453
  %v521 = vpop.f32.mrb[0].mxu0
  %v522 = vadd.f32 %v449, %v521
  %v523 = vpop.f32.mrb[0].mxu0
  %524 = vdwg.mxu0
  %v525 = vld [vmem:[%s8] sm:$0x1]
  %v527 = vlaneseq
  %v528 = vshrl.u32 %v527, 7
  %v529 = vsub.s32 0, %v528
  %v530 = vrot.slane %v525, %v529
  %v532 = vadd.f32 %v522, %v530
  %v533 = vmul.f32 %v532, 0.1
  %v534 = vmax.f32 %v532, %v533
  %v535 = vld [vmem:[%s9] sm:$0xff]
  %v536 = vld [vmem:[%s9 + $0x8] sm:$0xff]
  %v537 = vld [vmem:[%s9 + $0x10] sm:$0xff]
  %v538 = vld [vmem:[%s9 + $0x18] sm:$0xff]
  %v539 = vld [vmem:[%s10] sm:$0x1]
  %v541 = vlaneseq
  %v542 = vshrl.u32 %v541, 7
  %v543 = vsub.s32 0, %v542
  %v544 = vrot.slane %v539, %v543
  %v547 = vsel %vm378, %v534, 0
  %549 = vmatprep.subr.mxu0 0.0
  %550 = vmatpush1.msra.mxu0 %v535
  %551 = vmatprep.subr.mxu0 0.0
  %552 = vmatpush1.msra.mxu0 %v536
  %553 = vmatprep.subr.mxu0 0.0
  %554 = vmatpush1.msra.mxu0 %v537
  %555 = vmatprep.subr.mxu0 0.0
  %556 = vmatpush1.msra.mxu0 %v538
  %557 = vmatprep.subr.mxu0 0.0
  %558 = vmatpush1.msra.mxu0 0.0
  %559 = vmatprep.subr.mxu0 0.0
  %560 = vmatpush1.msra.mxu0 0.0
  %561 = vmatprep.subr.mxu0 0.0
  %562 = vmatpush1.msra.mxu0 0.0
  %563 = vmatprep.subr.mxu0 0.0
  %564 = vmatpush1.msra.mxu0 0.0
  %565 = vmatprep.subr.mxu0 0.0
  %566 = vmatpush1.msra.mxu0 0.0
  %567 = vmatprep.subr.mxu0 0.0
  %568 = vmatpush1.msra.mxu0 0.0
  %569 = vmatprep.subr.mxu0 0.0
  %570 = vmatpush1.msra.mxu0 0.0
  %571 = vmatprep.subr.mxu0 0.0
  %572 = vmatpush1.msra.mxu0 0.0
  %573 = vmatprep.subr.mxu0 0.0
  %574 = vmatpush1.msra.mxu0 0.0
  %575 = vmatprep.subr.mxu0 0.0
  %576 = vmatpush1.msra.mxu0 0.0
  %577 = vmatprep.subr.mxu0 0.0
  %578 = vmatpush1.msra.mxu0 0.0
  %579 = vmatprep.subr.mxu0 0.0
  %580 = vmatpush1.msra.mxu0 0.0
  %581 = vmatprep.subr.mxu0 0.0
  %582 = vmatpush1.msra.mxu0 0.0
  %583 = vmatprep.subr.mxu0 0.0
  %584 = vmatpush1.msra.mxu0 0.0
  %585 = vmatprep.subr.mxu0 0.0
  %586 = vmatpush1.msra.mxu0 0.0
  %587 = vmatprep.subr.mxu0 0.0
  %588 = vmatpush1.msra.mxu0 0.0
  %589 = vmatprep.subr.mxu0 0.0
  %590 = vmatpush1.msra.mxu0 0.0
  %591 = vmatprep.subr.mxu0 0.0
  %592 = vmatpush1.msra.mxu0 0.0
  %593 = vmatprep.subr.mxu0 0.0
  %594 = vmatpush1.msra.mxu0 0.0
  %595 = vmatprep.subr.mxu0 0.0
  %596 = vmatpush1.msra.mxu0 0.0
  %597 = vmatprep.subr.mxu0 0.0
  %598 = vmatpush1.msra.mxu0 0.0
  %599 = vmatprep.subr.mxu0 0.0
  %600 = vmatpush1.msra.mxu0 0.0
  %601 = vmatprep.subr.mxu0 0.0
  %602 = vmatpush1.msra.mxu0 0.0
  %603 = vmatprep.subr.mxu0 0.0
  %604 = vmatpush1.msra.mxu0 0.0
  %605 = vmatprep.subr.mxu0 0.0
  %606 = vmatpush1.msra.mxu0 0.0
  %607 = vmatprep.subr.mxu0 0.0
  %608 = vmatpush1.msra.mxu0 0.0
  %609 = vmatprep.subr.mxu0 0.0
  %610 = vmatpush1.msra.mxu0 0.0
  %611 = vmatprep.subr.mxu0 0.0
  %612 = vmatpush1.msra.mxu0 0.0
  %613 = vmatprep.mubr.f32.mxu0 0.0
  %614 = vmatmul.mubr.f32.gmra.mrb[0].mxu0 %v547
  %v615 = vpop.f32.mrb[0].mxu0
  %v616 = vadd.f32 %v544, %v615
  %v617 = vpop.f32.mrb[0].mxu0
  %618 = vdwg.mxu0
  %v619 = vmul.f32 %v616, 0.1
  %v620 = vmax.f32 %v616, %v619
  %v621 = vld [vmem:[%s11] sm:$0xff]
  %v622 = vld [vmem:[%s11 + $0x8] sm:$0xff]
  %v623 = vld [vmem:[%s12] sm:$0x1]
  %v625 = vlaneseq
  %v626 = vshrl.u32 %v625, 7
  %v627 = vsub.s32 0, %v626
  %v628 = vrot.slane %v623, %v627
  %vm630 = vcmask 130048
  %v632 = vsel %vm630, %v620, 0
  %634 = vmatprep.subr.mxu0 0.0
  %635 = vmatpush1.msra.mxu0 %v621
  %636 = vmatprep.subr.mxu0 0.0
  %637 = vmatpush1.msra.mxu0 %v622
  %638 = vmatprep.subr.mxu0 0.0
  %639 = vmatpush1.msra.mxu0 0.0
  %640 = vmatprep.subr.mxu0 0.0
  %641 = vmatpush1.msra.mxu0 0.0
  %642 = vmatprep.subr.mxu0 0.0
  %643 = vmatpush1.msra.mxu0 0.0
  %644 = vmatprep.subr.mxu0 0.0
  %645 = vmatpush1.msra.mxu0 0.0
  %646 = vmatprep.subr.mxu0 0.0
  %647 = vmatpush1.msra.mxu0 0.0
  %648 = vmatprep.subr.mxu0 0.0
  %649 = vmatpush1.msra.mxu0 0.0
  %650 = vmatprep.subr.mxu0 0.0
  %651 = vmatpush1.msra.mxu0 0.0
  %652 = vmatprep.subr.mxu0 0.0
  %653 = vmatpush1.msra.mxu0 0.0
  %654 = vmatprep.subr.mxu0 0.0
  %655 = vmatpush1.msra.mxu0 0.0
  %656 = vmatprep.subr.mxu0 0.0
  %657 = vmatpush1.msra.mxu0 0.0
  %658 = vmatprep.subr.mxu0 0.0
  %659 = vmatpush1.msra.mxu0 0.0
  %660 = vmatprep.subr.mxu0 0.0
  %661 = vmatpush1.msra.mxu0 0.0
  %662 = vmatprep.subr.mxu0 0.0
  %663 = vmatpush1.msra.mxu0 0.0
  %664 = vmatprep.subr.mxu0 0.0
  %665 = vmatpush1.msra.mxu0 0.0
  %666 = vmatprep.subr.mxu0 0.0
  %667 = vmatpush1.msra.mxu0 0.0
  %668 = vmatprep.subr.mxu0 0.0
  %669 = vmatpush1.msra.mxu0 0.0
  %670 = vmatprep.subr.mxu0 0.0
  %671 = vmatpush1.msra.mxu0 0.0
  %672 = vmatprep.subr.mxu0 0.0
  %673 = vmatpush1.msra.mxu0 0.0
  %674 = vmatprep.subr.mxu0 0.0
  %675 = vmatpush1.msra.mxu0 0.0
  %676 = vmatprep.subr.mxu0 0.0
  %677 = vmatpush1.msra.mxu0 0.0
  %678 = vmatprep.subr.mxu0 0.0
  %679 = vmatpush1.msra.mxu0 0.0
  %680 = vmatprep.subr.mxu0 0.0
  %681 = vmatpush1.msra.mxu0 0.0
  %682 = vmatprep.subr.mxu0 0.0
  %683 = vmatpush1.msra.mxu0 0.0
  %684 = vmatprep.subr.mxu0 0.0
  %685 = vmatpush1.msra.mxu0 0.0
  %686 = vmatprep.subr.mxu0 0.0
  %687 = vmatpush1.msra.mxu0 0.0
  %688 = vmatprep.subr.mxu0 0.0
  %689 = vmatpush1.msra.mxu0 0.0
  %690 = vmatprep.subr.mxu0 0.0
  %691 = vmatpush1.msra.mxu0 0.0
  %692 = vmatprep.subr.mxu0 0.0
  %693 = vmatpush1.msra.mxu0 0.0
  %694 = vmatprep.subr.mxu0 0.0
  %695 = vmatpush1.msra.mxu0 0.0
  %696 = vmatprep.subr.mxu0 0.0
  %697 = vmatpush1.msra.mxu0 0.0
  %698 = vmatprep.mubr.f32.mxu0 0.0
  %699 = vmatmul.mubr.f32.gmra.mrb[0].mxu0 %v632
  %v700 = vpop.f32.mrb[0].mxu0
  %v701 = vadd.f32 %v628, %v700
  %v702 = vpop.f32.mrb[0].mxu0
  %703 = vdwg.mxu0
  %v704 = vsub.f32 0.0, %v701
  %v705 = vmul.f32 %v704, 1.442695
  %v706 = vpow.pop %v705
  %v707 = vadd.f32 %v706, 1.0
  %v708 = vrcp.pop %v707
  %709 = vst [vmem:[%s13] sm:$0xff] %v708
  // Predicated region
  $region54: #{_forward_impl.1} parent=0 // pred_check
    _
  $region55: #{_forward_impl.1} parent=0 // pred_check_branch
    %711 = sbr.rel (0) target = $region57
  $region56: #{_forward_impl.1} parent=0 // pred_region
    _
  $region57: #{_forward_impl.1} parent=0 // pred_fallthru
    _
  // Predicated region
  $region58: #{_forward_impl.1} parent=0 // pred_check
    _
  $region59: #{_forward_impl.1} parent=0 // pred_check_branch
    %713 = sbr.rel (0) target = $region61
  $region60: #{_forward_impl.1} parent=0 // pred_region
    _
  $region61: #{_forward_impl.1} parent=0 // pred_fallthru
    _

</llo_original>
